<compile_context>
chip_gen: v7x
topology: tpu7x:2x2x1
jax: 0.10.0
libtpu: 0.0.40
codegen_flags: <defaults>
</compile_context>

<pallas_src>
import jax
import jax.numpy as jnp
from jax.experimental import pallas as pl
from jax.experimental.pallas import tpu as pltpu


def _spatial_attention_kernel(x_ref, w1t_ref, b1_ref, w2t_ref, b2_ref,
                              out_ref, attn_ref):
    # x_ref: (C, TP) -- channels on sublanes, pixels on lanes, native dtype.
    x = x_ref[...]
    # 1x1 conv #1: (Ch, C) @ (C, TP) -> (Ch, TP) in f32, bias + ReLU.
    h = jnp.dot(w1t_ref[...], x, preferred_element_type=jnp.float32)
    h = jnp.maximum(h + b1_ref[...], 0.0)
    # 1x1 conv #2: (1, Ch) @ (Ch, TP) -> (1, TP) in f32, bias + sigmoid.
    a = jnp.dot(w2t_ref[...], h, preferred_element_type=jnp.float32)
    a = jax.nn.sigmoid(a + b2_ref[0])                 # b2: scalar from SMEM
    # Gate in the input dtype (keeps bf16 native; no-op for f32) -- lane-dense.
    out_ref[...] = (x * a.astype(x.dtype)).astype(out_ref.dtype)
    attn_ref[...] = a[None].astype(attn_ref.dtype)    # (1, 1, TP), lane-dense


def _round_up(x, m):
    return ((x + m - 1) // m) * m


def _hw_config():
    """Per-generation VMEM / tile budgets (HBM-bound kernel: maximize bytes/step)."""
    vmem_phys = 128 * 1024 * 1024
    try:
        info = pltpu.get_tpu_info()
        vmem_phys = int(getattr(info, "vmem_capacity_bytes", vmem_phys))
    except Exception:
        pass
    if vmem_phys <= 64 * 1024 * 1024:
        # v7x: 64 MiB VMEM/TC -> ~3 MiB x-tiles; double-buffered x+out+attn
        # stays well under a 40 MiB scoped limit.
        return {"vmem_limit_bytes": 40 * 1024 * 1024,
                "x_tile_budget_bytes": 3 * 1024 * 1024}
    # v5e / v6e: 128 MiB physical VMEM -> raise the scoped limit and use
    # ~6 MiB x-tiles so the ~0.35 us per-step overhead is <10% at HBM roofline.
    return {"vmem_limit_bytes": 64 * 1024 * 1024,
            "x_tile_budget_bytes": 6 * 1024 * 1024}


def _pick_tile(P, C, itemsize, x_tile_budget_bytes, n_batch, min_steps=4):
    """Pixel tile: multiple of 128, <= budget, keeps >= min_steps grid steps."""
    full = _round_up(P, 128)
    tp = max(128, (x_tile_budget_bytes // (C * itemsize)) // 128 * 128)
    # Keep enough grid steps for v7x megacore sharding / pipelining.
    want_blocks = max(1, -(-min_steps // max(n_batch, 1)))   # ceil(min_steps/N)
    cap = max(128, _round_up(-(-P // want_blocks), 128))
    return min(tp, cap, full)


def spatial_attention(x_nchw, w1, b1, w2, b2, *, tile_pixels=None,
                      vmem_limit_bytes=None, donate_input=False):
    """x_nchw: (N, C, H, W). w1: (C, C//4), b1: (C//4,), w2: (C//4, 1), b2: (1,)."""
    N, C, H, W = x_nchw.shape
    Ch = w1.shape[1]
    dtype = x_nchw.dtype
    P = H * W
    itemsize = jnp.dtype(dtype).itemsize

    # TODO(synk): pad the channel dim to the sublane multiple (8 for f32,
    # 16 for bf16) instead of asserting, to support arbitrary in_channels.
    assert C % 8 == 0, "in_channels must be a multiple of 8 for the (C, tp) tile"

    cfg = _hw_config()
    if vmem_limit_bytes is None:
        vmem_limit_bytes = cfg["vmem_limit_bytes"]
    if tile_pixels is None:
        tp = _pick_tile(P, C, itemsize, cfg["x_tile_budget_bytes"], N)
    else:
        tp = max(128, min(_round_up(P, 128), (tile_pixels // 128) * 128))

    grid = (N, pl.cdiv(P, tp))       # ragged last pixel tile handled by Pallas

    # Pure reshape (NCHW is already contiguous as (N*C, H*W)) -- no transpose.
    x_flat = x_nchw.reshape(N * C, P)

    w1t = w1.T.astype(dtype)                       # (Ch, C): native dtype into MXU
    b1_col = b1.reshape(Ch, 1).astype(jnp.float32) # broadcast over lanes in-kernel
    w2t = w2.T.astype(jnp.float32)                 # (1, Ch): h is already f32
    b2_s = b2.reshape(1).astype(jnp.float32)       # scalar, lives in SMEM

    M = N * P
    cost = pl.CostEstimate(
        flops=2 * M * C * Ch + 2 * M * Ch + M * C,
        transcendentals=M,
        bytes_accessed=2 * M * C * itemsize + M * itemsize,
    )

    out_flat, attn_flat = pl.pallas_call(
        _spatial_attention_kernel,
        out_shape=(
            jax.ShapeDtypeStruct((N * C, P), dtype),
            jax.ShapeDtypeStruct((N, 1, P), dtype),
        ),
        grid_spec=pltpu.PrefetchScalarGridSpec(
            num_scalar_prefetch=0,
            grid=grid,
            in_specs=[
                pl.BlockSpec((C, tp), lambda n, p: (n, p)),         # x tile
                pl.BlockSpec((Ch, C), lambda n, p: (0, 0)),         # W1^T (resident)
                pl.BlockSpec((Ch, 1), lambda n, p: (0, 0)),         # b1 (resident)
                pl.BlockSpec((1, Ch), lambda n, p: (0, 0)),         # W2^T (resident)
                pl.BlockSpec(memory_space=pltpu.MemorySpace.SMEM),  # b2 scalar
            ],
            out_specs=[
                pl.BlockSpec((C, tp), lambda n, p: (n, p)),         # gated output
                pl.BlockSpec((1, 1, tp), lambda n, p: (n, 0, p)),   # attention map
            ],
        ),
        compiler_params=pltpu.CompilerParams(
            dimension_semantics=("parallel", "parallel"),
            vmem_limit_bytes=vmem_limit_bytes,
        ),
        cost_estimate=cost,
        # Optional: reuse x's HBM buffer for the gated output when the caller
        # no longer needs x (avoids a second N*C*P allocation).
        input_output_aliases=({0: 0} if donate_input else {}),
    )(x_flat, w1t, b1_col, w2t, b2_s)

    out = out_flat.reshape(N, C, H, W)
    attn = attn_flat.reshape(N, 1, H, W)
    return out, attn


def _reference(x_nchw, w1, b1, w2, b2):
    # pure-JAX reference of the torch forward (1x1 convs as einsum)
    h = jnp.einsum('nchw,cd->ndhw', x_nchw, w1) + b1[None, :, None, None]
    h = jnp.maximum(h, 0.0)
    a = jnp.einsum('ndhw,do->nohw', h, w2) + b2[None, :, None, None]
    a = jax.nn.sigmoid(a)
    return x_nchw * a, a


if __name__ == "__main__":
    key = jax.random.PRNGKey(0)
    N, C, H, W = 2, 16, 16, 16          # in_channels=16 -> hidden=4
    Ch = C // 4

    k_x, k_w1, k_b1, k_w2, k_b2 = jax.random.split(key, 5)
    x = jax.random.normal(k_x, (N, C, H, W), dtype=jnp.float32)
    # synthetic params matching torch conv shapes (out,in,1,1) collapsed to (in,out)
    w1 = jax.random.normal(k_w1, (C, Ch), dtype=jnp.float32) * 0.1
    b1 = jax.random.normal(k_b1, (Ch,), dtype=jnp.float32) * 0.1
    w2 = jax.random.normal(k_w2, (Ch, 1), dtype=jnp.float32) * 0.1
    b2 = jax.random.normal(k_b2, (1,), dtype=jnp.float32) * 0.1

    out, attn = spatial_attention(x, w1, b1, w2, b2)
    out = jax.block_until_ready(out)
    attn = jax.block_until_ready(attn)

    ref_out, ref_attn = _reference(x, w1, b1, w2, b2)
    assert out.shape == (N, C, H, W)
    assert attn.shape == (N, 1, H, W)
    assert jnp.allclose(out, ref_out, atol=1e-5, rtol=1e-5)
    assert jnp.allclose(attn, ref_attn, atol=1e-5, rtol=1e-5)

    print("KERNEL_OK")
</pallas_src>

<mosaic_0001>
module attributes {stable_mosaic.version = 11 : i64} {
  func.func @_spatial_attention_kernel(%arg0: i32, %arg1: i32, %arg2: memref<16x128xf32, #tpu.memory_space<vmem>>, %arg3: memref<4x16xf32, #tpu.memory_space<vmem>>, %arg4: memref<4x1xf32, #tpu.memory_space<vmem>>, %arg5: memref<1x4xf32, #tpu.memory_space<vmem>>, %arg6: memref<1xf32, #tpu.memory_space<smem>>, %arg7: memref<16x128xf32, #tpu.memory_space<vmem>>, %arg8: memref<1x1x128xf32, #tpu.memory_space<vmem>>) attributes {dimension_semantics = [#tpu.dimension_semantics<parallel>, #tpu.dimension_semantics<parallel>], iteration_bounds = array<i64: 2, 2>, scalar_prefetch = 0 : i64, scratch_operands = 0 : i64, tpu.core_type = #tpu.core_type<tc>, window_params = [{transform_indices = @transform_0, window_bounds = array<i64: 16, 128>}, {pipeline_mode = #tpu.pipeline_mode<synchronous>, transform_indices = @transform_1, window_bounds = array<i64: 4, 16>}, {pipeline_mode = #tpu.pipeline_mode<synchronous>, transform_indices = @transform_2, window_bounds = array<i64: 4, 1>}, {pipeline_mode = #tpu.pipeline_mode<synchronous>, transform_indices = @transform_3, window_bounds = array<i64: 1, 4>}, {transform_indices = @transform_4, window_bounds = array<i64: 1>}, {transform_indices = @transform_5, window_bounds = array<i64: 16, 128>}, {transform_indices = @transform_6, window_bounds = array<i64: 1, 1, 128>}]} {
    %c0 = arith.constant 0 : index
    %c0_0 = arith.constant 0 : index
    %0 = vector.load %arg2[%c0, %c0_0] : memref<16x128xf32, #tpu.memory_space<vmem>>, vector<16x128xf32>
    %c0_1 = arith.constant 0 : index
    %c0_2 = arith.constant 0 : index
    %1 = vector.load %arg3[%c0_1, %c0_2] : memref<4x16xf32, #tpu.memory_space<vmem>>, vector<4x16xf32>
    %cst = arith.constant dense<0.000000e+00> : vector<4x128xf32>
    %2 = tpu.matmul %1, %0, %cst {dimension_numbers = #tpu.dot_dimension_numbers<[1], [0], [0], [1], [0, 0, 1, 1], [], []>} : vector<4x16xf32>, vector<16x128xf32>, vector<4x128xf32> -> vector<4x128xf32>
    %c0_3 = arith.constant 0 : index
    %c0_4 = arith.constant 0 : index
    %3 = vector.load %arg4[%c0_3, %c0_4] : memref<4x1xf32, #tpu.memory_space<vmem>>, vector<4x1xf32>
    %4 = vector.broadcast %3 : vector<4x1xf32> to vector<4x128xf32>
    %5 = arith.addf %2, %4 : vector<4x128xf32>
    %cst_5 = arith.constant 0.000000e+00 : f32
    %6 = vector.broadcast %cst_5 : f32 to vector<4x128xf32>
    %7 = arith.maximumf %5, %6 : vector<4x128xf32>
    %c0_6 = arith.constant 0 : index
    %c0_7 = arith.constant 0 : index
    %8 = vector.load %arg5[%c0_6, %c0_7] : memref<1x4xf32, #tpu.memory_space<vmem>>, vector<1x4xf32>
    %cst_8 = arith.constant dense<0.000000e+00> : vector<1x128xf32>
    %9 = tpu.matmul %8, %7, %cst_8 {dimension_numbers = #tpu.dot_dimension_numbers<[1], [0], [0], [1], [0, 0, 1, 1], [], []>} : vector<1x4xf32>, vector<4x128xf32>, vector<1x128xf32> -> vector<1x128xf32>
    %c0_9 = arith.constant 0 : index
    %10 = memref.load %arg6[%c0_9] : memref<1xf32, #tpu.memory_space<smem>>
    %11 = vector.broadcast %10 : f32 to vector<1x128xf32>
    %12 = arith.addf %9, %11 : vector<1x128xf32>
    %13 = arith.negf %12 : vector<1x128xf32>
    %14 = math.exp %13 : vector<1x128xf32>
    %cst_10 = arith.constant 1.000000e+00 : f32
    %15 = vector.broadcast %cst_10 : f32 to vector<1x128xf32>
    %16 = arith.addf %15, %14 : vector<1x128xf32>
    %17 = arith.divf %15, %16 : vector<1x128xf32>
    %18 = vector.broadcast %17 : vector<1x128xf32> to vector<16x128xf32>
    %19 = arith.mulf %0, %18 : vector<16x128xf32>
    %c0_11 = arith.constant 0 : index
    %c0_12 = arith.constant 0 : index
    %20 = vector.load %arg7[%c0_11, %c0_12] : memref<16x128xf32, #tpu.memory_space<vmem>>, vector<16x128xf32>
    tpu.vector_store %arg7[%c0_11, %c0_12], %19 {strides = array<i32>} : memref<16x128xf32, #tpu.memory_space<vmem>>, vector<16x128xf32>,
    %21 = vector.shape_cast %17 : vector<1x128xf32> to vector<1x1x128xf32>
    %c0_13 = arith.constant 0 : index
    %c0_14 = arith.constant 0 : index
    %c0_15 = arith.constant 0 : index
    %22 = vector.load %arg8[%c0_13, %c0_14, %c0_15] : memref<1x1x128xf32, #tpu.memory_space<vmem>>, vector<1x1x128xf32>
    tpu.vector_store %arg8[%c0_13, %c0_14, %c0_15], %21 {strides = array<i32>} : memref<1x1x128xf32, #tpu.memory_space<vmem>>, vector<1x1x128xf32>,
    return
  }
  func.func @transform_0(%arg0: i32, %arg1: i32) -> (i32, i32) {
    %c0_i32 = arith.constant 0 : i32
    return %arg0, %arg1 : i32, i32
  }
  func.func @transform_1(%arg0: i32, %arg1: i32) -> (i32, i32) {
    %c0_i32 = arith.constant 0 : i32
    %c0_i32_0 = arith.constant 0 : i32
    %c0_i32_1 = arith.constant 0 : i32
    return %c0_i32, %c0_i32_0 : i32, i32
  }
  func.func @transform_2(%arg0: i32, %arg1: i32) -> (i32, i32) {
    %c0_i32 = arith.constant 0 : i32
    %c0_i32_0 = arith.constant 0 : i32
    %c0_i32_1 = arith.constant 0 : i32
    return %c0_i32, %c0_i32_0 : i32, i32
  }
  func.func @transform_3(%arg0: i32, %arg1: i32) -> (i32, i32) {
    %c0_i32 = arith.constant 0 : i32
    %c0_i32_0 = arith.constant 0 : i32
    %c0_i32_1 = arith.constant 0 : i32
    return %c0_i32, %c0_i32_0 : i32, i32
  }
  func.func @transform_4(%arg0: i32, %arg1: i32) -> i32 {
    %c0_i32 = arith.constant 0 : i32
    %c0_i32_0 = arith.constant 0 : i32
    return %c0_i32 : i32
  }
  func.func @transform_5(%arg0: i32, %arg1: i32) -> (i32, i32) {
    %c0_i32 = arith.constant 0 : i32
    return %arg0, %arg1 : i32, i32
  }
  func.func @transform_6(%arg0: i32, %arg1: i32) -> (i32, i32, i32) {
    %c0_i32 = arith.constant 0 : i32
    %c0_i32_0 = arith.constant 0 : i32
    return %arg0, %c0_i32, %arg1 : i32, i32, i32
  }
}

</mosaic_0001>

<llo_original>
// kernel: tpu_custom_call.1
$region0: #{tpu_custom_call.1}
  #allocation0 [shape = 'u32[]', space=smem, size = 0x4, offset = 0x4, fixed_abs, tag = 'smem constant byte address 0x4 - core index']
  #allocation1 [shape = 'u32[144,128]{1,0:T(1,128)}', space=vmem, size = 0x12000, scoped, tag = 'internal scratch']
  #allocation2 [shape = 'f32[1]{0:T(128)S(6)}', space=smem, size = 0x200, scoped, tag = 'scoped memory for tpu_custom_call.1']
  %s0 = inlined_call_operand.hbm [shape: f32[32,256], index: 0, kind: input, shape index: {}]
  %s1 = inlined_call_operand.hbm [shape: f32[4,16], index: 1, kind: input, shape index: {}]
  %s2 = inlined_call_operand.hbm [shape: f32[4,1], index: 2, kind: input, shape index: {}]
  %s3 = inlined_call_operand.hbm [shape: f32[1,4], index: 3, kind: input, shape index: {}]
  %s4 = inlined_call_operand.<no memory space> [shape: f32[1], index: 4, kind: input, shape index: {}]
  %s5 = inlined_call_operand.hbm [shape: f32[32,256], index: 5, kind: output, shape index: {0}]
  %s6 = inlined_call_operand.hbm [shape: f32[2,1,256], index: 6, kind: output, shape index: {1}]
  %7 = xla_tuple %s5, %s6
  %s8 = sld [smem:[#allocation0]]
  $region77: #{tpu_custom_call.1} parent=0
    _
  %s10 = ssub.s32 1, %s8
  %s11 = scalar_select 0, %s10, %s8
  %12 = sst [smem:[#allocation2]] %s4
  $region1: #{tpu_custom_call.1} parent=0
    #allocation3 [shape = 'u8[16384]{0}', space=vmem, size = 0x4000, scoped, tag = 'input window, operand 0']
    #allocation4 [shape = 's32[2]{0}', space=sflag, size = 0x8, scoped, tag = 'scoped memory for tpu_custom_call.1']
    #allocation5 [shape = 's32[2]{0}', space=sflag, size = 0x8, scoped, tag = 'scoped memory for tpu_custom_call.1']
    #allocation6 [shape = 'u8[2048]{0}', space=vmem, size = 0x800, scoped, tag = 'input window, operand 1, single buffered']
    #allocation7 [shape = 's32[1]{0}', space=sflag, size = 0x4, scoped, tag = 'scoped memory for tpu_custom_call.1']
    #allocation8 [shape = 'u8[2048]{0}', space=vmem, size = 0x800, scoped, tag = 'input window, operand 2, single buffered']
    #allocation9 [shape = 'u8[512]{0}', space=vmem, size = 0x400, scoped, tag = 'input window, operand 3, single buffered']
    #allocation10 [shape = 's32[1]{0}', space=sflag, size = 0x4, scoped, tag = 'scoped memory for tpu_custom_call.1']
    #allocation11 [shape = 'u8[16384]{0}', space=vmem, size = 0x4000, scoped, tag = 'output window, operand 0']
    #allocation12 [shape = 'u8[1024]{0}', space=vmem, size = 0x400, scoped, tag = 'output window, operand 1']
    #allocation13 [shape = 's32[2]{0}', space=sflag, size = 0x8, scoped, tag = 'scoped memory for tpu_custom_call.1']
    %13 = vsyncpa [#allocation4], 0
    %s14 = scalar_lea.sflag [#allocation4], 1
    %15 = vsyncpa %s14, 0
    %16 = vsyncpa [#allocation7], 0
    %17 = vsyncpa [#allocation10], 0
    %18 = vsyncpa [#allocation5], 0
    %s19 = scalar_lea.sflag [#allocation5], 1
    %20 = vsyncpa %s19, 0
    %21 = vsyncpa [#allocation13], 0
    %s22 = scalar_lea.sflag [#allocation13], 1
    %23 = vsyncpa %s22, 0
    loop: start=0, step=1, limit=6
    $region2: #{tpu_custom_call.1} parent=1 // loop_pre_header
      _
    $region3: #{tpu_custom_call.1} parent=1 // loop_header
      %s25 = sphi 0, %s29
      %p26 = scmp.ge.s32.totalorder %s25, 6
      %s32 = sphi 0, %s44
      %s33 = sphi 0, %s40
      %s34 = sphi 0, %s32
      %s35 = sphi 0, %s33
      %s36 = sphi 0, %s34
      %s37 = sphi 0, %s35
      %s49 = sphi 0, %s51
      %s52 = sphi 0, %s49
      %s53 = sphi 0, %s52
      %s69 = sphi 0, %s53
      %s73 = sphi 0, %s73
      %s75 = sphi 0, %s73
      %s76 = sphi 0, %s75
      %s90 = sphi 0, %s76
      %s94 = sphi 0, %s94
      %s96 = sphi 0, %s94
      %s97 = sphi 0, %s96
      %s111 = sphi 0, %s97
      %s115 = sphi 0, %s115
      %s117 = sphi 0, %s115
      %s118 = sphi 0, %s117
      %s132 = sphi 0, %s118
      %s136 = sphi 0, %s136
      %s138 = sphi 0, %s136
      %s139 = sphi 0, %s138
      %s153 = sphi 0, %s139
      %s161 = sphi 0, %s163
      %s164 = sphi 0, %s161
      %s165 = sphi 0, %s164
      %s181 = sphi 0, %s165
      %s189 = sphi 0, %s191
      %s192 = sphi 0, %s189
      %s193 = sphi 0, %s192
      %s209 = sphi 0, %s193
    $region4: #{tpu_custom_call.1} parent=1 // loop_header_branch
      %28 = sbr.rel (%p26) target = $region8
    $region5: #{tpu_custom_call.1} parent=1 // loop_body
      %s30 = ssub.s32 %s25, 1
      %s31 = ssub.s32 %s25, 2
      %s38 = sadd.s32 1, %s33
      %p39 = scmp.ge.s32.totalorder %s38, 2
      %s40 = scalar_select %p39, 0, %s38
      %s41 = sadd.s32 1, %s32
      %s42 = scalar_select %p39, %s41, %s32
      %p43 = scmp.ge.s32.totalorder %s42, 2
      %s44 = scalar_select %p43, 0, %s42
      %s45 = ssub.s32 %s32, %s44
      %s46 = ssub.s32 %s33, %s40
      %s47 = sor.u32 %s45, %s46
      %p48 = scmp.eq.s32.totalorder %s47, 0
      %s50 = sadd.s32 %s49, 1
      %s51 = scalar_select %p48, %s49, %s50
      %p54 = pneg %p48
      %p55 = scmp.eq.s32.totalorder %s25, 3
      %p56 = por %p54, %p55
      %p57 = scmp.ne.s32.totalorder %s49, %s52
      %p58 = scmp.eq.s32.totalorder %s25, 0
      %p59 = por %p57, %p58
      %p60 = scmp.ne.s32.totalorder %s49, %s52
      %p61 = scmp.eq.s32.totalorder %s30, 3
      %p62 = por %p60, %p61
      %p63 = scmp.ne.s32.totalorder %s52, %s53
      %p64 = scmp.eq.s32.totalorder %s30, 0
      %p65 = por %p63, %p64
      %p66 = scmp.ne.s32.totalorder %s52, %s53
      %p67 = scmp.eq.s32.totalorder %s31, 3
      %p68 = por %p66, %p67
      %p70 = scmp.ne.s32.totalorder %s53, %s69
      %p71 = scmp.eq.s32.totalorder %s31, 0
      %p72 = por %p70, %p71
      %s74 = sadd.s32 %s73, 1
      %p77 = scmp.eq.s32.totalorder %s25, 3
      %p78 = scmp.ne.s32.totalorder %s73, %s75
      %p79 = scmp.eq.s32.totalorder %s25, 0
      %p80 = por %p78, %p79
      %p81 = scmp.ne.s32.totalorder %s73, %s75
      %p82 = scmp.eq.s32.totalorder %s30, 3
      %p83 = por %p81, %p82
      %p84 = scmp.ne.s32.totalorder %s75, %s76
      %p85 = scmp.eq.s32.totalorder %s30, 0
      %p86 = por %p84, %p85
      %p87 = scmp.ne.s32.totalorder %s75, %s76
      %p88 = scmp.eq.s32.totalorder %s31, 3
      %p89 = por %p87, %p88
      %p91 = scmp.ne.s32.totalorder %s76, %s90
      %p92 = scmp.eq.s32.totalorder %s31, 0
      %p93 = por %p91, %p92
      %s95 = sadd.s32 %s94, 1
      %p98 = scmp.eq.s32.totalorder %s25, 3
      %p99 = scmp.ne.s32.totalorder %s94, %s96
      %p100 = scmp.eq.s32.totalorder %s25, 0
      %p101 = por %p99, %p100
      %p102 = scmp.ne.s32.totalorder %s94, %s96
      %p103 = scmp.eq.s32.totalorder %s30, 3
      %p104 = por %p102, %p103
      %p105 = scmp.ne.s32.totalorder %s96, %s97
      %p106 = scmp.eq.s32.totalorder %s30, 0
      %p107 = por %p105, %p106
      %p108 = scmp.ne.s32.totalorder %s96, %s97
      %p109 = scmp.eq.s32.totalorder %s31, 3
      %p110 = por %p108, %p109
      %p112 = scmp.ne.s32.totalorder %s97, %s111
      %p113 = scmp.eq.s32.totalorder %s31, 0
      %p114 = por %p112, %p113
      %s116 = sadd.s32 %s115, 1
      %p119 = scmp.eq.s32.totalorder %s25, 3
      %p120 = scmp.ne.s32.totalorder %s115, %s117
      %p121 = scmp.eq.s32.totalorder %s25, 0
      %p122 = por %p120, %p121
      %p123 = scmp.ne.s32.totalorder %s115, %s117
      %p124 = scmp.eq.s32.totalorder %s30, 3
      %p125 = por %p123, %p124
      %p126 = scmp.ne.s32.totalorder %s117, %s118
      %p127 = scmp.eq.s32.totalorder %s30, 0
      %p128 = por %p126, %p127
      %p129 = scmp.ne.s32.totalorder %s117, %s118
      %p130 = scmp.eq.s32.totalorder %s31, 3
      %p131 = por %p129, %p130
      %p133 = scmp.ne.s32.totalorder %s118, %s132
      %p134 = scmp.eq.s32.totalorder %s31, 0
      %p135 = por %p133, %p134
      %s137 = sadd.s32 %s136, 1
      %p140 = scmp.eq.s32.totalorder %s25, 3
      %p141 = scmp.ne.s32.totalorder %s136, %s138
      %p142 = scmp.eq.s32.totalorder %s25, 0
      %p143 = por %p141, %p142
      %p144 = scmp.ne.s32.totalorder %s136, %s138
      %p145 = scmp.eq.s32.totalorder %s30, 3
      %p146 = por %p144, %p145
      %p147 = scmp.ne.s32.totalorder %s138, %s139
      %p148 = scmp.eq.s32.totalorder %s30, 0
      %p149 = por %p147, %p148
      %p150 = scmp.ne.s32.totalorder %s138, %s139
      %p151 = scmp.eq.s32.totalorder %s31, 3
      %p152 = por %p150, %p151
      %p154 = scmp.ne.s32.totalorder %s139, %s153
      %p155 = scmp.eq.s32.totalorder %s31, 0
      %p156 = por %p154, %p155
      %s157 = ssub.s32 %s32, %s44
      %s158 = ssub.s32 %s33, %s40
      %s159 = sor.u32 %s157, %s158
      %p160 = scmp.eq.s32.totalorder %s159, 0
      %s162 = sadd.s32 %s161, 1
      %s163 = scalar_select %p160, %s161, %s162
      %p166 = pneg %p160
      %p167 = scmp.eq.s32.totalorder %s25, 3
      %p168 = por %p166, %p167
      %p169 = scmp.ne.s32.totalorder %s161, %s164
      %p170 = scmp.eq.s32.totalorder %s25, 0
      %p171 = por %p169, %p170
      %p172 = scmp.ne.s32.totalorder %s161, %s164
      %p173 = scmp.eq.s32.totalorder %s30, 3
      %p174 = por %p172, %p173
      %p175 = scmp.ne.s32.totalorder %s164, %s165
      %p176 = scmp.eq.s32.totalorder %s30, 0
      %p177 = por %p175, %p176
      %p178 = scmp.ne.s32.totalorder %s164, %s165
      %p179 = scmp.eq.s32.totalorder %s31, 3
      %p180 = por %p178, %p179
      %p182 = scmp.ne.s32.totalorder %s165, %s181
      %p183 = scmp.eq.s32.totalorder %s31, 0
      %p184 = por %p182, %p183
      %s185 = ssub.s32 %s32, %s44
      %s186 = ssub.s32 %s33, %s40
      %s187 = sor.u32 %s185, %s186
      %p188 = scmp.eq.s32.totalorder %s187, 0
      %s190 = sadd.s32 %s189, 1
      %s191 = scalar_select %p188, %s189, %s190
      %p194 = pneg %p188
      %p195 = scmp.eq.s32.totalorder %s25, 3
      %p196 = por %p194, %p195
      %p197 = scmp.ne.s32.totalorder %s189, %s192
      %p198 = scmp.eq.s32.totalorder %s25, 0
      %p199 = por %p197, %p198
      %p200 = scmp.ne.s32.totalorder %s189, %s192
      %p201 = scmp.eq.s32.totalorder %s30, 3
      %p202 = por %p200, %p201
      %p203 = scmp.ne.s32.totalorder %s192, %s193
      %p204 = scmp.eq.s32.totalorder %s30, 0
      %p205 = por %p203, %p204
      %p206 = scmp.ne.s32.totalorder %s192, %s193
      %p207 = scmp.eq.s32.totalorder %s31, 3
      %p208 = por %p206, %p207
      %p210 = scmp.ne.s32.totalorder %s193, %s209
      %p211 = scmp.eq.s32.totalorder %s31, 0
      %p212 = por %p210, %p211
      %p213 = scmp.le.s32.totalorder 1, %s25
      %p214 = scmp.lt.s32.totalorder %s25, 5
      %p215 = pnand %p213, %p214
      %p216 = pneg %p215
      // Predicated region
      $region9: #{tpu_custom_call.1} parent=5 // pred_check
        _
      $region10: #{tpu_custom_call.1} parent=5 // pred_check_branch
        %218 = sbr.rel (%p215) target = $region12
      $region11: #{tpu_custom_call.1} parent=5 // pred_region
        %s219 = ssub.s32 %s25, 1
        // Predicated region
        $region13: #{tpu_custom_call.1} parent=11 // pred_check
          %p220 = pneg %p86
        $region14: #{tpu_custom_call.1} parent=11 // pred_check_branch
          %222 = sbr.rel (%p220) target = $region16
        $region15: #{tpu_custom_call.1} parent=11 // pred_region
          %s224 = ssub.s32 64, 64
          %225 = vsyncadd [#allocation7], %s224
          %s227 = sshll.u32 [#allocation6], 4
          %s228 = int_to_ptr.vmem [resolvable:$true] %s227
          %230 = dma.hbm_to_vmem [thread:$0]  %s1, 64, %s228, [#allocation7]
        $region16: #{tpu_custom_call.1} parent=11 // pred_fallthru
          _
        // Predicated region
        $region17: #{tpu_custom_call.1} parent=11 // pred_check
          %p231 = pneg %p107
        $region18: #{tpu_custom_call.1} parent=11 // pred_check_branch
          %233 = sbr.rel (%p231) target = $region20
        $region19: #{tpu_custom_call.1} parent=11 // pred_region
          %s235 = ssub.s32 64, 64
          %236 = vsyncadd [#allocation7], %s235
          %s238 = sshll.u32 [#allocation8], 4
          %s239 = int_to_ptr.vmem [resolvable:$true] %s238
          %241 = dma.hbm_to_vmem [thread:$0]  %s2, 64, %s239, [#allocation7]
        $region20: #{tpu_custom_call.1} parent=11 // pred_fallthru
          _
        // Predicated region
        $region21: #{tpu_custom_call.1} parent=11 // pred_check
          %p242 = pneg %p128
        $region22: #{tpu_custom_call.1} parent=11 // pred_check_branch
          %244 = sbr.rel (%p242) target = $region24
        $region23: #{tpu_custom_call.1} parent=11 // pred_region
          %s246 = ssub.s32 16, 16
          %247 = vsyncadd [#allocation10], %s246
          %s249 = sshll.u32 [#allocation9], 4
          %s250 = int_to_ptr.vmem [resolvable:$true] %s249
          %252 = dma.hbm_to_vmem [thread:$0]  %s3, 16, %s250, [#allocation10]
        $region24: #{tpu_custom_call.1} parent=11 // pred_fallthru
          _
        // Predicated region
        $region25: #{tpu_custom_call.1} parent=11 // pred_check
          %p253 = pneg %p149
        $region26: #{tpu_custom_call.1} parent=11 // pred_check_branch
          %255 = sbr.rel (%p253) target = $region28
        $region27: #{tpu_custom_call.1} parent=11 // pred_region
          _
        $region28: #{tpu_custom_call.1} parent=11 // pred_fallthru
          _
      $region12: #{tpu_custom_call.1} parent=5 // pred_fallthru
        _
      %p256 = scmp.lt.s32.totalorder %s25, 4
      // Predicated region
      $region29: #{tpu_custom_call.1} parent=5 // pred_check
        %p257 = pneg %p256
      $region30: #{tpu_custom_call.1} parent=5 // pred_check_branch
        %259 = sbr.rel (%p257) target = $region32
      $region31: #{tpu_custom_call.1} parent=5 // pred_region
        // Predicated region
        $region33: #{tpu_custom_call.1} parent=31 // pred_check
          %p260 = pneg %p59
        $region34: #{tpu_custom_call.1} parent=31 // pred_check_branch
          %262 = sbr.rel (%p260) target = $region36
        $region35: #{tpu_custom_call.1} parent=31 // pred_region
          %s263 = sand.u32 %s49, 1
          %s264 = scalar_lea.sflag [#allocation4], %s263
          %s265 = sand.u32 %s49, 1
          %s266 = smul.addr %s265, 16
          %s267 = scalar_lea.vmem [#allocation3], %s266
          %s268 = smul.u32 2, %s32
          %s270 = ssub.s32 256, 256
          %271 = vsyncadd %s264, %s270
          %s272 = smul.addr %s268, 2
          %s273 = sadd.s32 %s33, %s272
          %s274 = smul.addr %s273, 128
          %s275 = scalar_lea.hbm %s0, %s274
          %s276 = sshll.u32 %s267, 4
          %s277 = int_to_ptr.vmem [resolvable:$true] %s276
          %282 = dma.hbm_to_vmem [thread:$0]  %s275, 256, %s277, %s264, 256, 128, 8
        $region36: #{tpu_custom_call.1} parent=31 // pred_fallthru
          _
      $region32: #{tpu_custom_call.1} parent=5 // pred_fallthru
        _
      %p283 = scmp.le.s32.totalorder 1, %s25
      %p284 = scmp.lt.s32.totalorder %s25, 5
      %p285 = pnand %p283, %p284
      %p286 = pneg %p285
      // Predicated region
      $region37: #{tpu_custom_call.1} parent=5 // pred_check
        _
      $region38: #{tpu_custom_call.1} parent=5 // pred_check_branch
        %288 = sbr.rel (%p285) target = $region40
      $region39: #{tpu_custom_call.1} parent=5 // pred_region
        %s289 = ssub.s32 %s25, 1
        %s290 = sand.u32 %s52, 1
        %s291 = scalar_lea.sflag [#allocation4], %s290
        %s292 = sand.u32 %s52, 1
        %s293 = smul.addr %s292, 16
        %s294 = scalar_lea.vmem [#allocation3], %s293
        // Predicated region
        $region41: #{tpu_custom_call.1} parent=39 // pred_check
          %p295 = pneg %p65
        $region42: #{tpu_custom_call.1} parent=39 // pred_check_branch
          %297 = sbr.rel (%p295) target = $region44
        $region43: #{tpu_custom_call.1} parent=39 // pred_region
          %298 = dma.done %s291, 256
        $region44: #{tpu_custom_call.1} parent=39 // pred_fallthru
          _
        // Predicated region
        $region45: #{tpu_custom_call.1} parent=39 // pred_check
          %p299 = pneg %p86
        $region46: #{tpu_custom_call.1} parent=39 // pred_check_branch
          %301 = sbr.rel (%p299) target = $region48
        $region47: #{tpu_custom_call.1} parent=39 // pred_region
          %302 = dma.done [#allocation7], 64
        $region48: #{tpu_custom_call.1} parent=39 // pred_fallthru
          _
        // Predicated region
        $region49: #{tpu_custom_call.1} parent=39 // pred_check
          %p303 = pneg %p107
        $region50: #{tpu_custom_call.1} parent=39 // pred_check_branch
          %305 = sbr.rel (%p303) target = $region52
        $region51: #{tpu_custom_call.1} parent=39 // pred_region
          %306 = dma.done [#allocation7], 64
        $region52: #{tpu_custom_call.1} parent=39 // pred_fallthru
          _
        // Predicated region
        $region53: #{tpu_custom_call.1} parent=39 // pred_check
          %p307 = pneg %p128
        $region54: #{tpu_custom_call.1} parent=39 // pred_check_branch
          %309 = sbr.rel (%p307) target = $region56
        $region55: #{tpu_custom_call.1} parent=39 // pred_region
          %310 = dma.done [#allocation10], 16
        $region56: #{tpu_custom_call.1} parent=39 // pred_fallthru
          _
        %s311 = sand.u32 %s52, 1
        %s312 = scalar_lea.sflag [#allocation4], %s311
        %s313 = sand.u32 %s52, 1
        %s314 = smul.addr %s313, 16
        %s315 = scalar_lea.vmem [#allocation3], %s314
        %p316 = pneg %p65
        %p317 = pneg %p62
        %p318 = pneg %p86
        %p319 = pneg %p83
        %p320 = pneg %p107
        %p321 = pneg %p104
        %p322 = pneg %p128
        %p323 = pneg %p125
        %p324 = pneg %p149
        %p325 = pneg %p146
        %p326 = pneg %p177
        %p327 = pneg %p174
        %s328 = sand.u32 %s164, 1
        %s329 = scalar_lea.sflag [#allocation5], %s328
        %s330 = sand.u32 %s164, 1
        %s331 = smul.addr %s330, 16
        %s332 = scalar_lea.vmem [#allocation11], %s331
        %p333 = pneg %p205
        %p334 = pneg %p202
        %s335 = sand.u32 %s192, 1
        %s336 = scalar_lea.sflag [#allocation13], %s335
        %s337 = sand.u32 %s192, 1
        %s338 = scalar_lea.vmem [#allocation12], %s337
        %s339 = smul.u32 2, %s34
        %s340 = smul.u32 2, %s34
        %v341 = vld [vmem:[%s294] sm:$0xff]
        %v342 = vld [vmem:[%s294 + $0x8] sm:$0xff]
        %v343 = vld [vmem:[#allocation6] sm:$0xf]
        %v344 = vld [vmem:[#allocation8] sm:$0xf]
        %346 = vset.pattern.permute.xlu0 0
        %347 = vperm.xlu0 %346, %v344
        %v348 = vpop.permute.xlu0 %347
        %vm350 = vcmask 130048
        %v352 = vsel %vm350, %v343, 0
        %354 = vmatprep.subr.mxu0 0.0
        %355 = vmatpush1.msra.mxu0 %v341
        %356 = vmatprep.subr.mxu0 0.0
        %357 = vmatpush1.msra.mxu0 %v342
        %358 = vmatprep.subr.mxu0 0.0
        %359 = vmatpush1.msra.mxu0 0.0
        %360 = vmatprep.subr.mxu0 0.0
        %361 = vmatpush1.msra.mxu0 0.0
        %362 = vmatprep.subr.mxu0 0.0
        %363 = vmatpush1.msra.mxu0 0.0
        %364 = vmatprep.subr.mxu0 0.0
        %365 = vmatpush1.msra.mxu0 0.0
        %366 = vmatprep.subr.mxu0 0.0
        %367 = vmatpush1.msra.mxu0 0.0
        %368 = vmatprep.subr.mxu0 0.0
        %369 = vmatpush1.msra.mxu0 0.0
        %370 = vmatprep.subr.mxu0 0.0
        %371 = vmatpush1.msra.mxu0 0.0
        %372 = vmatprep.subr.mxu0 0.0
        %373 = vmatpush1.msra.mxu0 0.0
        %374 = vmatprep.subr.mxu0 0.0
        %375 = vmatpush1.msra.mxu0 0.0
        %376 = vmatprep.subr.mxu0 0.0
        %377 = vmatpush1.msra.mxu0 0.0
        %378 = vmatprep.subr.mxu0 0.0
        %379 = vmatpush1.msra.mxu0 0.0
        %380 = vmatprep.subr.mxu0 0.0
        %381 = vmatpush1.msra.mxu0 0.0
        %382 = vmatprep.subr.mxu0 0.0
        %383 = vmatpush1.msra.mxu0 0.0
        %384 = vmatprep.subr.mxu0 0.0
        %385 = vmatpush1.msra.mxu0 0.0
        %386 = vmatprep.subr.mxu0 0.0
        %387 = vmatpush1.msra.mxu0 0.0
        %388 = vmatprep.subr.mxu0 0.0
        %389 = vmatpush1.msra.mxu0 0.0
        %390 = vmatprep.subr.mxu0 0.0
        %391 = vmatpush1.msra.mxu0 0.0
        %392 = vmatprep.subr.mxu0 0.0
        %393 = vmatpush1.msra.mxu0 0.0
        %394 = vmatprep.subr.mxu0 0.0
        %395 = vmatpush1.msra.mxu0 0.0
        %396 = vmatprep.subr.mxu0 0.0
        %397 = vmatpush1.msra.mxu0 0.0
        %398 = vmatprep.subr.mxu0 0.0
        %399 = vmatpush1.msra.mxu0 0.0
        %400 = vmatprep.subr.mxu0 0.0
        %401 = vmatpush1.msra.mxu0 0.0
        %402 = vmatprep.subr.mxu0 0.0
        %403 = vmatpush1.msra.mxu0 0.0
        %404 = vmatprep.subr.mxu0 0.0
        %405 = vmatpush1.msra.mxu0 0.0
        %406 = vmatprep.subr.mxu0 0.0
        %407 = vmatpush1.msra.mxu0 0.0
        %408 = vmatprep.subr.mxu0 0.0
        %409 = vmatpush1.msra.mxu0 0.0
        %410 = vmatprep.subr.mxu0 0.0
        %411 = vmatpush1.msra.mxu0 0.0
        %412 = vmatprep.subr.mxu0 0.0
        %413 = vmatpush1.msra.mxu0 0.0
        %414 = vmatprep.subr.mxu0 0.0
        %415 = vmatpush1.msra.mxu0 0.0
        %416 = vmatprep.subr.mxu0 0.0
        %417 = vmatpush1.msra.mxu0 0.0
        %418 = vmatprep.mubr.f32.mxu0 0.0
        %419 = vmatmul.mubr.f32.gmra.mrb[0].mxu0 %v352
        %v420 = vpop.f32.mrb[0].mxu0
        %v421 = vadd.f32 %v348, %v420
        %v422 = vpop.f32.mrb[0].mxu0
        %423 = vdwg.mxu0
        %v424 = vmax.f32 %v421, 0.0
        %v425 = vld [vmem:[#allocation9] sm:$0x1]
        %s426 = sld [smem:[#allocation2]]
        %v427 = vstv %s426
        %vm428 = vcmask 31744
        %v430 = vsel %vm428, %v425, 0
        %vm432 = vcmask 1043456
        %v434 = vsel %vm432, %v424, 0
        %436 = vmatprep.subr.mxu0 0.0
        %437 = vmatpush1.msra.mxu0 %v434
        %438 = vmatprep.subr.mxu0 0.0
        %439 = vmatpush1.msra.mxu0 0.0
        %440 = vmatprep.subr.mxu0 0.0
        %441 = vmatpush1.msra.mxu0 0.0
        %442 = vmatprep.subr.mxu0 0.0
        %443 = vmatpush1.msra.mxu0 0.0
        %444 = vmatprep.subr.mxu0 0.0
        %445 = vmatpush1.msra.mxu0 0.0
        %446 = vmatprep.subr.mxu0 0.0
        %447 = vmatpush1.msra.mxu0 0.0
        %448 = vmatprep.subr.mxu0 0.0
        %449 = vmatpush1.msra.mxu0 0.0
        %450 = vmatprep.subr.mxu0 0.0
        %451 = vmatpush1.msra.mxu0 0.0
        %452 = vmatprep.subr.mxu0 0.0
        %453 = vmatpush1.msra.mxu0 0.0
        %454 = vmatprep.subr.mxu0 0.0
        %455 = vmatpush1.msra.mxu0 0.0
        %456 = vmatprep.subr.mxu0 0.0
        %457 = vmatpush1.msra.mxu0 0.0
        %458 = vmatprep.subr.mxu0 0.0
        %459 = vmatpush1.msra.mxu0 0.0
        %460 = vmatprep.subr.mxu0 0.0
        %461 = vmatpush1.msra.mxu0 0.0
        %462 = vmatprep.subr.mxu0 0.0
        %463 = vmatpush1.msra.mxu0 0.0
        %464 = vmatprep.subr.mxu0 0.0
        %465 = vmatpush1.msra.mxu0 0.0
        %466 = vmatprep.subr.mxu0 0.0
        %467 = vmatpush1.msra.mxu0 0.0
        %468 = vmatprep.subr.mxu0 0.0
        %469 = vmatpush1.msra.mxu0 0.0
        %470 = vmatprep.subr.mxu0 0.0
        %471 = vmatpush1.msra.mxu0 0.0
        %472 = vmatprep.subr.mxu0 0.0
        %473 = vmatpush1.msra.mxu0 0.0
        %474 = vmatprep.subr.mxu0 0.0
        %475 = vmatpush1.msra.mxu0 0.0
        %476 = vmatprep.subr.mxu0 0.0
        %477 = vmatpush1.msra.mxu0 0.0
        %478 = vmatprep.subr.mxu0 0.0
        %479 = vmatpush1.msra.mxu0 0.0
        %480 = vmatprep.subr.mxu0 0.0
        %481 = vmatpush1.msra.mxu0 0.0
        %482 = vmatprep.subr.mxu0 0.0
        %483 = vmatpush1.msra.mxu0 0.0
        %484 = vmatprep.subr.mxu0 0.0
        %485 = vmatpush1.msra.mxu0 0.0
        %486 = vmatprep.subr.mxu0 0.0
        %487 = vmatpush1.msra.mxu0 0.0
        %488 = vmatprep.subr.mxu0 0.0
        %489 = vmatpush1.msra.mxu0 0.0
        %490 = vmatprep.subr.mxu0 0.0
        %491 = vmatpush1.msra.mxu0 0.0
        %492 = vmatprep.subr.mxu0 0.0
        %493 = vmatpush1.msra.mxu0 0.0
        %494 = vmatprep.subr.mxu0 0.0
        %495 = vmatpush1.msra.mxu0 0.0
        %496 = vmatprep.subr.mxu0 0.0
        %497 = vmatpush1.msra.mxu0 0.0
        %498 = vmatprep.subr.mxu0 0.0
        %499 = vmatpush1.msra.mxu0 0.0
        %500 = vmatprep.mubr.f32.mxu0 0.0
        %501 = vmatmul.mubr.f32.gmra.mrb[0].mxu0 %v430
        %v502 = vpop.f32.mrb[0].mxu0
        %v503 = vadd.f32 %v427, %v502
        %v504 = vpop.f32.mrb[0].mxu0
        %505 = vdwg.mxu0
        %v506 = vxor.u32 %v503, 2147483648
        %v507 = vmul.f32 %v506, 1.442695
        %v508 = vpow.pop %v507
        %v509 = vadd.f32 %v508, 1.0
        %v510 = vrcp.pop %v509
        %v511 = vmul.f32 1.0, %v510
        %v512 = vlaneseq
        %v513 = vshrl.u32 %v512, 7
        %v514 = vsub.s32 0, %v513
        %v515 = vrot.slane %v511, %v514
        %v516 = vmul.f32 %v341, %v515
        %v517 = vmul.f32 %v342, %v515
        %518 = vst [vmem:[%s332] sm:$0xff] %v516
        %519 = vst [vmem:[%s332 + $0x8] sm:$0xff] %v517
        %520 = vst [vmem:[%s338] sm:$0x1] %v511
        %s521 = sand.u32 %s164, 1
        %s522 = scalar_lea.sflag [#allocation5], %s521
        %s523 = sand.u32 %s164, 1
        %s524 = smul.addr %s523, 16
        %s525 = scalar_lea.vmem [#allocation11], %s524
        %s526 = sand.u32 %s192, 1
        %s527 = scalar_lea.sflag [#allocation13], %s526
        %s528 = sand.u32 %s192, 1
        %s529 = scalar_lea.vmem [#allocation12], %s528
        // Predicated region
        $region57: #{tpu_custom_call.1} parent=39 // pred_check
          %p530 = pneg %p174
        $region58: #{tpu_custom_call.1} parent=39 // pred_check_branch
          %532 = sbr.rel (%p530) target = $region60
        $region59: #{tpu_custom_call.1} parent=39 // pred_region
          %s533 = smul.u32 2, %s34
          %s535 = ssub.s32 256, 256
          %536 = vsyncadd %s522, %s535
          %s537 = smul.addr %s533, 2
          %s538 = sadd.s32 %s35, %s537
          %s539 = smul.addr %s538, 128
          %s540 = scalar_lea.hbm %s5, %s539
          %s541 = sshll.u32 %s525, 4
          %s542 = int_to_ptr.vmem [resolvable:$true] %s541
          %547 = dma.vmem_to_hbm [thread:$0]  %s542, 256, %s540, %s522, 128, 256, 8
        $region60: #{tpu_custom_call.1} parent=39 // pred_fallthru
          _
        // Predicated region
        $region61: #{tpu_custom_call.1} parent=39 // pred_check
          %p548 = pneg %p202
        $region62: #{tpu_custom_call.1} parent=39 // pred_check_branch
          %550 = sbr.rel (%p548) target = $region64
        $region63: #{tpu_custom_call.1} parent=39 // pred_region
          %s552 = ssub.s32 16, 16
          %553 = vsyncadd %s527, %s552
          %s554 = smul.addr %s34, 2
          %s555 = sadd.s32 %s35, %s554
          %s556 = smul.addr %s555, 16
          %s557 = scalar_lea.hbm %s6, %s556
          %s559 = sshll.u32 %s529, 4
          %s560 = int_to_ptr.vmem [resolvable:$true] %s559
          %562 = dma.vmem_to_hbm [thread:$0]  %s560, 16, %s557, %s527
        $region64: #{tpu_custom_call.1} parent=39 // pred_fallthru
          _
      $region40: #{tpu_custom_call.1} parent=5 // pred_fallthru
        _
      %p563 = scmp.le.s32.totalorder 2, %s25
      // Predicated region
      $region65: #{tpu_custom_call.1} parent=5 // pred_check
        %p564 = pneg %p563
      $region66: #{tpu_custom_call.1} parent=5 // pred_check_branch
        %566 = sbr.rel (%p564) target = $region68
      $region67: #{tpu_custom_call.1} parent=5 // pred_region
        %s567 = ssub.s32 %s25, 2
        // Predicated region
        $region69: #{tpu_custom_call.1} parent=67 // pred_check
          %p568 = pneg %p180
        $region70: #{tpu_custom_call.1} parent=67 // pred_check_branch
          %570 = sbr.rel (%p568) target = $region72
        $region71: #{tpu_custom_call.1} parent=67 // pred_region
          %s571 = sand.u32 %s165, 1
          %s572 = scalar_lea.sflag [#allocation5], %s571
          %s573 = sand.u32 %s165, 1
          %s574 = smul.addr %s573, 16
          %s575 = scalar_lea.vmem [#allocation11], %s574
          %576 = dma.done %s572, 256
        $region72: #{tpu_custom_call.1} parent=67 // pred_fallthru
          _
        // Predicated region
        $region73: #{tpu_custom_call.1} parent=67 // pred_check
          %p577 = pneg %p208
        $region74: #{tpu_custom_call.1} parent=67 // pred_check_branch
          %579 = sbr.rel (%p577) target = $region76
        $region75: #{tpu_custom_call.1} parent=67 // pred_region
          %s580 = sand.u32 %s193, 1
          %s581 = scalar_lea.sflag [#allocation13], %s580
          %s582 = sand.u32 %s193, 1
          %s583 = scalar_lea.vmem [#allocation12], %s582
          %584 = dma.done %s581, 16
        $region76: #{tpu_custom_call.1} parent=67 // pred_fallthru
          _
      $region68: #{tpu_custom_call.1} parent=5 // pred_fallthru
        _
    $region6: #{tpu_custom_call.1} parent=1 // loop_footer
      %s29 = sadd.s32 1, %s25
    $region7: #{tpu_custom_call.1} parent=1 // loop_footer_branch
      %24 = sbr.rel target = $region3
    $region8: #{tpu_custom_call.1} parent=1 // loop_exit
      _
    %585 = vsyncpa [#allocation4], 1
    %s586 = scalar_lea.sflag [#allocation4], 1
    %587 = vsyncpa %s586, 1
    %588 = vsyncpa [#allocation7], 1
    %589 = vsyncpa [#allocation10], 1
    %590 = vsyncpa [#allocation5], 1
    %s591 = scalar_lea.sflag [#allocation5], 1
    %592 = vsyncpa %s591, 1
    %593 = vsyncpa [#allocation13], 1
    %s594 = scalar_lea.sflag [#allocation13], 1
    %595 = vsyncpa %s594, 1

</llo_original>
